<compile_context>
chip_gen: v6e
topology: v6e:2x2x1
jax: 0.10.0
libtpu: 0.0.40
codegen_flags: <defaults>
</compile_context>

<pallas_src>
import functools

import jax
import jax.numpy as jnp
from jax.experimental import pallas as pl
from jax.experimental.pallas import tpu as pltpu


def _round_up(x, m):
    return (x + m - 1) // m * m


def _cdiv(a, b):
    return -(-a // b)


def _vmem_capacity_bytes():
    try:
        cap = getattr(pltpu.get_tpu_info(), "vmem_capacity_bytes", None)
        if cap:
            return int(cap)
    except Exception:
        pass
    return 64 * 1024 * 1024  # conservative default (v7x-sized)


def _pick_tile_m(m, row_align, budget, fixed_bytes, per_row_bytes, tile_m_cap):
    """Largest row tile (multiple of row_align, <= tile_m_cap) fitting the VMEM budget,
    then shrunk if needed so the grid has >= 2 steps (megacore / pipelining)."""
    upper = max(row_align, min(tile_m_cap, _round_up(m, row_align)))
    avail = max(budget - fixed_bytes, row_align * per_row_bytes)
    tile = (avail // per_row_bytes) // row_align * row_align
    tile = max(row_align, min(upper, tile))
    if _cdiv(m, tile) < 2 and _round_up(m, row_align) > row_align:
        tile = max(row_align, _round_up(_cdiv(m, 2), row_align))
    return tile


def _ln_rows(y, vecs, *, eps, n_valid):
    """Per-row LayerNorm (PyTorch semantics) in f32. y: (TM, W), vecs: (3, W) f32.
    If W > n_valid the extra lanes are zero-padded and masked out of the statistics."""
    width = y.shape[-1]
    inv_n = jnp.float32(1.0 / n_valid)
    mean = jnp.sum(y, axis=-1, keepdims=True) * inv_n          # padded lanes are exactly 0
    d = y - mean
    if width != n_valid:                                       # static (trace-time) branch
        lane = jax.lax.broadcasted_iota(jnp.int32, (1, width), 1)
        d = jnp.where(lane < n_valid, d, jnp.float32(0.0))
    var = jnp.sum(d * d, axis=-1, keepdims=True) * inv_n       # two-pass: no cancellation
    y_hat = d * jax.lax.rsqrt(var + jnp.float32(eps))
    return y_hat * vecs[1:2, :] + vecs[2:3, :]                 # gamma / beta (padded lanes -> 0)


def _downsample_kernel(x_ref, w_ref, v_ref, o_ref, *, eps, n_valid):
    # x_ref: (TM, C_in) native dtype; w_ref: (C_in, W) native dtype (zero-padded cols if W>C_out)
    # v_ref: (3, W) f32 = [fc bias; LN gamma; LN beta]; o_ref: (TM, W)
    y = jnp.dot(x_ref[...], w_ref[...], preferred_element_type=jnp.float32)
    vecs = v_ref[...]
    y = y + vecs[0:1, :]
    o_ref[...] = _ln_rows(y, vecs, eps=eps, n_valid=n_valid).astype(o_ref.dtype)


def _downsample_kernel_ktiled(x_ref, w_ref, v_ref, o_ref, acc_ref, *, eps, n_valid):
    # K-tiled variant: grid = (rows, k). acc_ref: (TM, W) f32 scratch.
    k = pl.program_id(1)

    @pl.when(k == 0)
    def _():
        acc_ref[...] = jnp.zeros_like(acc_ref)

    acc_ref[...] += jnp.dot(x_ref[...], w_ref[...], preferred_element_type=jnp.float32)

    @pl.when(k == pl.num_programs(1) - 1)
    def _():
        vecs = v_ref[...]
        y = acc_ref[...] + vecs[0:1, :]
        o_ref[...] = _ln_rows(y, vecs, eps=eps, n_valid=n_valid).astype(o_ref.dtype)


def downsample(x, weight, bias, ln_weight, ln_bias, *, eps=1e-5, tile_m_cap=2048):
    """x: (..., C_in). weight: (C_out, C_in) as in nn.Linear. Returns (..., C_out)."""
    orig_shape = x.shape
    c_in = orig_shape[-1]
    c_out = weight.shape[0]

    x2d = x.reshape(-1, c_in)
    m = x2d.shape[0]

    x_itemsize = jnp.dtype(x.dtype).itemsize
    row_align = max(8, 32 // max(x_itemsize, 1))   # 8 for f32, 16 for bf16, 32 for 8-bit

    # Output lane layout: pad C_out to a 128 multiple only when inflation <= 25%; otherwise emit
    # the true width (block == full last dim -> legal) to avoid 8x extra HBM output bytes.
    c_out_128 = _round_up(c_out, 128)
    pad_cols = (c_out_128 == c_out) or (c_out_128 * 4 <= c_out * 5)
    c_out_w = c_out_128 if pad_cols else c_out

    w_t = weight.T.astype(x.dtype)                                # (C_in, C_out), native MXU dtype
    if c_out_w != c_out:
        w_t = jnp.pad(w_t, ((0, 0), (0, c_out_w - c_out)))        # zero cols -> zero padded lanes

    vecs = jnp.zeros((3, c_out_w), dtype=jnp.float32)
    vecs = vecs.at[0, :c_out].set(bias.astype(jnp.float32))
    vecs = vecs.at[1, :c_out].set(ln_weight.astype(jnp.float32))
    vecs = vecs.at[2, :c_out].set(ln_bias.astype(jnp.float32))

    # Per-generation VMEM budget / scoped limit cap.
    vmem_cap = _vmem_capacity_bytes()
    if vmem_cap <= 64 * 1024 * 1024:       # v7x-class: 64 MiB physical per TC, 2 TCs/chip
        tile_budget, limit_cap = 28 * 1024 * 1024, 48 * 1024 * 1024
    else:                                  # v5e / v6e: 128 MiB physical
        tile_budget, limit_cap = 88 * 1024 * 1024, 100 * 1024 * 1024

    w_itemsize = jnp.dtype(w_t.dtype).itemsize
    out_itemsize = x_itemsize
    lane_c_in = _round_up(c_in, 128)
    lane_c_out = _round_up(c_out_w, 128)
    w_resident = _round_up(c_in, 8) * lane_c_out * w_itemsize
    vecs_bytes = 8 * lane_c_out * 4

    use_ktile = (w_resident > tile_budget // 4) and (c_in % 128 == 0) and (c_in >= 256)
    # TODO(synk): very large weights whose c_in is NOT a multiple of 128 still keep the whole
    # W^T resident (no clean ragged-K reduction); this can exceed VMEM on v7x.

    if not use_ktile:
        per_row = 2 * lane_c_in * x_itemsize + 2 * lane_c_out * out_itemsize
        fixed = w_resident + vecs_bytes                    # requested single-buffered
        tile_m = _pick_tile_m(m, row_align, tile_budget, fixed, per_row, tile_m_cap)
        grid = (_cdiv(m, tile_m),)

        def build(single_buffer):
            pm = dict(pipeline_mode=pl.Buffered(1)) if single_buffer else {}
            n_buf = 1 if single_buffer else 2
            working = tile_m * per_row + n_buf * (w_resident + vecs_bytes)
            vmem_limit = int(min(max(working + (4 << 20), 16 << 20), limit_cap))
            return pl.pallas_call(
                functools.partial(_downsample_kernel, eps=eps, n_valid=c_out),
                out_shape=jax.ShapeDtypeStruct((m, c_out_w), x.dtype),
                grid_spec=pltpu.PrefetchScalarGridSpec(
                    num_scalar_prefetch=0,
                    grid=grid,
                    in_specs=[
                        pl.BlockSpec((tile_m, c_in), lambda i: (i, 0)),           # x rows
                        pl.BlockSpec((c_in, c_out_w), lambda i: (0, 0), **pm),    # W^T (invariant)
                        pl.BlockSpec((3, c_out_w), lambda i: (0, 0), **pm),       # bias/gamma/beta
                    ],
                    out_specs=pl.BlockSpec((tile_m, c_out_w), lambda i: (i, 0)),
                ),
                compiler_params=pltpu.CompilerParams(
                    dimension_semantics=("parallel",),
                    vmem_limit_bytes=vmem_limit,
                ),
            )(x2d, w_t, vecs)

        try:
            out2d = build(True)
        except Exception:   # Buffered(1) not accepted by this Pallas build -> default buffering
            out2d = build(False)

    else:
        # K-tiled reduction: tk is the largest 128-multiple divisor of c_in whose double-buffered
        # W block stays within ~1/3 of the budget.
        candidates = [d for d in range(128, c_in + 1, 128) if c_in % d == 0]
        tk = candidates[0]
        for d in candidates:
            if 2 * d * lane_c_out * w_itemsize <= tile_budget // 3:
                tk = d
        per_row = 2 * tk * x_itemsize + 2 * lane_c_out * out_itemsize + lane_c_out * 4
        fixed = 2 * tk * lane_c_out * w_itemsize + vecs_bytes
        tile_m = _pick_tile_m(m, row_align, tile_budget, fixed, per_row, tile_m_cap)
        grid = (_cdiv(m, tile_m), c_in // tk)

        def build(single_buffer):
            pm = dict(pipeline_mode=pl.Buffered(1)) if single_buffer else {}
            working = tile_m * per_row + fixed + (0 if single_buffer else vecs_bytes)
            vmem_limit = int(min(max(working + (4 << 20), 16 << 20), limit_cap))
            return pl.pallas_call(
                functools.partial(_downsample_kernel_ktiled, eps=eps, n_valid=c_out),
                out_shape=jax.ShapeDtypeStruct((m, c_out_w), x.dtype),
                grid_spec=pltpu.PrefetchScalarGridSpec(
                    num_scalar_prefetch=0,
                    grid=grid,
                    in_specs=[
                        pl.BlockSpec((tile_m, tk), lambda i, k: (i, k)),          # x rows, K slab
                        pl.BlockSpec((tk, c_out_w), lambda i, k: (k, 0)),         # W^T K slab
                        pl.BlockSpec((3, c_out_w), lambda i, k: (0, 0), **pm),    # bias/gamma/beta
                    ],
                    out_specs=pl.BlockSpec((tile_m, c_out_w), lambda i, k: (i, 0)),
                    scratch_shapes=[pltpu.VMEM((tile_m, c_out_w), jnp.float32)],
                ),
                compiler_params=pltpu.CompilerParams(
                    dimension_semantics=("parallel", "arbitrary"),
                    vmem_limit_bytes=vmem_limit,
                ),
            )(x2d, w_t, vecs)

        try:
            out2d = build(True)
        except Exception:
            out2d = build(False)

    if c_out_w != c_out:
        out2d = out2d[:, :c_out]
    return out2d.reshape(*orig_shape[:-1], c_out)


def _reference(x, w, b, g, beta, eps=1e-5):
    y = x @ w.T + b
    mu = jnp.mean(y, axis=-1, keepdims=True)
    var = jnp.mean((y - mu) ** 2, axis=-1, keepdims=True)
    return (y - mu) / jnp.sqrt(var + eps) * g + beta


if __name__ == "__main__":
    # Downsample(input_dim=32, hidden_dim=64, output_dim=16); hidden_dim is unused by forward.
    batch, seq, input_dim, output_dim = 2, 8, 32, 16

    key = jax.random.PRNGKey(0)
    kx, kw, kb, kg, kbeta = jax.random.split(key, 5)

    x = jax.random.normal(kx, (batch, seq, input_dim), dtype=jnp.float32)
    fc_weight = jax.random.normal(kw, (output_dim, input_dim), dtype=jnp.float32) * 0.1
    fc_bias = jax.random.normal(kb, (output_dim,), dtype=jnp.float32) * 0.1
    ln_weight = 1.0 + 0.01 * jax.random.normal(kg, (output_dim,), dtype=jnp.float32)
    ln_bias = 0.01 * jax.random.normal(kbeta, (output_dim,), dtype=jnp.float32)

    out = jax.block_until_ready(downsample(x, fc_weight, fc_bias, ln_weight, ln_bias))
    ref = _reference(x, fc_weight, fc_bias, ln_weight, ln_bias)
    assert out.shape == (batch, seq, output_dim)
    assert jnp.allclose(out, ref, atol=1e-4, rtol=1e-4)

    # Second shape exercises the ragged row grid and the 128-lane-padded (masked LN) output path.
    k2x, k2w, k2b, k2g, k2beta = jax.random.split(kx, 5)
    x2 = jax.random.normal(k2x, (3, 6, 32), dtype=jnp.float32)
    w2 = jax.random.normal(k2w, (120, 32), dtype=jnp.float32) * 0.1
    b2 = jax.random.normal(k2b, (120,), dtype=jnp.float32) * 0.1
    g2 = 1.0 + 0.01 * jax.random.normal(k2g, (120,), dtype=jnp.float32)
    beta2 = 0.01 * jax.random.normal(k2beta, (120,), dtype=jnp.float32)

    out2 = jax.block_until_ready(downsample(x2, w2, b2, g2, beta2))
    ref2 = _reference(x2, w2, b2, g2, beta2)
    assert out2.shape == (3, 6, 120)
    assert jnp.allclose(out2, ref2, atol=1e-4, rtol=1e-4)

    print("KERNEL_OK")
</pallas_src>

<mosaic_0001>
module attributes {stable_mosaic.version = 11 : i64} {
  func.func @_downsample_kernel(%arg0: i32, %arg1: memref<8x32xf32, #tpu.memory_space<vmem>>, %arg2: memref<32x16xf32, #tpu.memory_space<vmem>>, %arg3: memref<3x16xf32, #tpu.memory_space<vmem>>, %arg4: memref<8x16xf32, #tpu.memory_space<vmem>>) attributes {dimension_semantics = [#tpu.dimension_semantics<parallel>], iteration_bounds = array<i64: 2>, scalar_prefetch = 0 : i64, scratch_operands = 0 : i64, tpu.core_type = #tpu.core_type<tc>, window_params = [{transform_indices = @transform_0, window_bounds = array<i64: 8, 32>}, {pipeline_mode = #tpu.pipeline_mode<synchronous>, transform_indices = @transform_1, window_bounds = array<i64: 32, 16>}, {pipeline_mode = #tpu.pipeline_mode<synchronous>, transform_indices = @transform_2, window_bounds = array<i64: 3, 16>}, {transform_indices = @transform_3, window_bounds = array<i64: 8, 16>}]} {
    %c0 = arith.constant 0 : index
    %c0_0 = arith.constant 0 : index
    %0 = vector.load %arg1[%c0, %c0_0] : memref<8x32xf32, #tpu.memory_space<vmem>>, vector<8x32xf32>
    %c0_1 = arith.constant 0 : index
    %c0_2 = arith.constant 0 : index
    %1 = vector.load %arg2[%c0_1, %c0_2] : memref<32x16xf32, #tpu.memory_space<vmem>>, vector<32x16xf32>
    %cst = arith.constant dense<0.000000e+00> : vector<8x16xf32>
    %2 = tpu.matmul %0, %1, %cst {dimension_numbers = #tpu.dot_dimension_numbers<[1], [0], [0], [1], [0, 0, 1, 1], [], []>} : vector<8x32xf32>, vector<32x16xf32>, vector<8x16xf32> -> vector<8x16xf32>
    %c0_3 = arith.constant 0 : index
    %c0_4 = arith.constant 0 : index
    %3 = vector.load %arg3[%c0_3, %c0_4] : memref<3x16xf32, #tpu.memory_space<vmem>>, vector<3x16xf32>
    %4 = vector.extract_strided_slice %3 {offsets = [0, 0], sizes = [1, 16], strides = [1, 1]} : vector<3x16xf32> to vector<1x16xf32>
    %5 = vector.broadcast %4 : vector<1x16xf32> to vector<8x16xf32>
    %6 = arith.addf %2, %5 : vector<8x16xf32>
    %cst_5 = arith.constant dense<0.000000e+00> : vector<8xf32>
    %7 = vector.multi_reduction <add>, %6, %cst_5 [1] : vector<8x16xf32> to vector<8xf32>
    %8 = vector.shape_cast %7 : vector<8xf32> to vector<8x1xf32>
    %cst_6 = arith.constant 6.250000e-02 : f32
    %9 = vector.broadcast %cst_6 : f32 to vector<8x1xf32>
    %10 = arith.mulf %8, %9 : vector<8x1xf32>
    %11 = vector.broadcast %10 : vector<8x1xf32> to vector<8x16xf32>
    %12 = arith.subf %6, %11 : vector<8x16xf32>
    %13 = arith.mulf %12, %12 : vector<8x16xf32>
    %cst_7 = arith.constant dense<0.000000e+00> : vector<8xf32>
    %14 = vector.multi_reduction <add>, %13, %cst_7 [1] : vector<8x16xf32> to vector<8xf32>
    %15 = vector.shape_cast %14 : vector<8xf32> to vector<8x1xf32>
    %cst_8 = arith.constant 6.250000e-02 : f32
    %16 = vector.broadcast %cst_8 : f32 to vector<8x1xf32>
    %17 = arith.mulf %15, %16 : vector<8x1xf32>
    %cst_9 = arith.constant 9.99999974E-6 : f32
    %18 = vector.broadcast %cst_9 : f32 to vector<8x1xf32>
    %19 = arith.addf %17, %18 : vector<8x1xf32>
    %20 = math.rsqrt %19 : vector<8x1xf32>
    %21 = vector.broadcast %20 : vector<8x1xf32> to vector<8x16xf32>
    %22 = arith.mulf %12, %21 : vector<8x16xf32>
    %23 = vector.extract_strided_slice %3 {offsets = [1, 0], sizes = [1, 16], strides = [1, 1]} : vector<3x16xf32> to vector<1x16xf32>
    %24 = vector.broadcast %23 : vector<1x16xf32> to vector<8x16xf32>
    %25 = arith.mulf %22, %24 : vector<8x16xf32>
    %26 = vector.extract_strided_slice %3 {offsets = [2, 0], sizes = [1, 16], strides = [1, 1]} : vector<3x16xf32> to vector<1x16xf32>
    %27 = vector.broadcast %26 : vector<1x16xf32> to vector<8x16xf32>
    %28 = arith.addf %25, %27 : vector<8x16xf32>
    %c0_10 = arith.constant 0 : index
    %c0_11 = arith.constant 0 : index
    %29 = vector.load %arg4[%c0_10, %c0_11] : memref<8x16xf32, #tpu.memory_space<vmem>>, vector<8x16xf32>
    tpu.vector_store %arg4[%c0_10, %c0_11], %28 {strides = array<i32>} : memref<8x16xf32, #tpu.memory_space<vmem>>, vector<8x16xf32>,
    return
  }
  func.func @transform_0(%arg0: i32) -> (i32, i32) {
    %c0_i32 = arith.constant 0 : i32
    %c0_i32_0 = arith.constant 0 : i32
    return %arg0, %c0_i32 : i32, i32
  }
  func.func @transform_1(%arg0: i32) -> (i32, i32) {
    %c0_i32 = arith.constant 0 : i32
    %c0_i32_0 = arith.constant 0 : i32
    %c0_i32_1 = arith.constant 0 : i32
    return %c0_i32, %c0_i32_0 : i32, i32
  }
  func.func @transform_2(%arg0: i32) -> (i32, i32) {
    %c0_i32 = arith.constant 0 : i32
    %c0_i32_0 = arith.constant 0 : i32
    %c0_i32_1 = arith.constant 0 : i32
    return %c0_i32, %c0_i32_0 : i32, i32
  }
  func.func @transform_3(%arg0: i32) -> (i32, i32) {
    %c0_i32 = arith.constant 0 : i32
    %c0_i32_0 = arith.constant 0 : i32
    return %arg0, %c0_i32 : i32, i32
  }
}

module attributes {stable_mosaic.version = 11 : i64} {
  func.func @_downsample_kernel(%arg0: i32, %arg1: memref<8x32xf32, #tpu.memory_space<vmem>>, %arg2: memref<32x16xf32, #tpu.memory_space<vmem>>, %arg3: memref<3x16xf32, #tpu.memory_space<vmem>>, %arg4: memref<8x16xf32, #tpu.memory_space<vmem>>) attributes {dimension_semantics = [#tpu.dimension_semantics<parallel>], iteration_bounds = array<i64: 2>, scalar_prefetch = 0 : i64, scratch_operands = 0 : i64, tpu.core_type = #tpu.core_type<tc>, window_params = [{transform_indices = @transform_0, window_bounds = array<i64: 8, 32>}, {pipeline_mode = #tpu.pipeline_mode<synchronous>, transform_indices = @transform_1, window_bounds = array<i64: 32, 16>}, {pipeline_mode = #tpu.pipeline_mode<synchronous>, transform_indices = @transform_2, window_bounds = array<i64: 3, 16>}, {transform_indices = @transform_3, window_bounds = array<i64: 8, 16>}]} {
    %c0 = arith.constant 0 : index
    %c0_0 = arith.constant 0 : index
    %0 = vector.load %arg1[%c0, %c0_0] : memref<8x32xf32, #tpu.memory_space<vmem>>, vector<8x32xf32>
    %c0_1 = arith.constant 0 : index
    %c0_2 = arith.constant 0 : index
    %1 = vector.load %arg2[%c0_1, %c0_2] : memref<32x16xf32, #tpu.memory_space<vmem>>, vector<32x16xf32>
    %cst = arith.constant dense<0.000000e+00> : vector<8x16xf32>
    %2 = tpu.matmul %0, %1, %cst {dimension_numbers = #tpu.dot_dimension_numbers<[1], [0], [0], [1], [0, 0, 1, 1], [], []>} : vector<8x32xf32>, vector<32x16xf32>, vector<8x16xf32> -> vector<8x16xf32>
    %c0_3 = arith.constant 0 : index
    %c0_4 = arith.constant 0 : index
    %3 = vector.load %arg3[%c0_3, %c0_4] : memref<3x16xf32, #tpu.memory_space<vmem>>, vector<3x16xf32>
    %4 = vector.extract_strided_slice %3 {offsets = [0, 0], sizes = [1, 16], strides = [1, 1]} : vector<3x16xf32> to vector<1x16xf32>
    %5 = vector.broadcast %4 : vector<1x16xf32> to vector<8x16xf32>
    %6 = arith.addf %2, %5 : vector<8x16xf32>
    %cst_5 = arith.constant dense<0.000000e+00> : vector<8xf32>
    %7 = vector.multi_reduction <add>, %6, %cst_5 [1] : vector<8x16xf32> to vector<8xf32>
    %8 = vector.shape_cast %7 : vector<8xf32> to vector<8x1xf32>
    %cst_6 = arith.constant 6.250000e-02 : f32
    %9 = vector.broadcast %cst_6 : f32 to vector<8x1xf32>
    %10 = arith.mulf %8, %9 : vector<8x1xf32>
    %11 = vector.broadcast %10 : vector<8x1xf32> to vector<8x16xf32>
    %12 = arith.subf %6, %11 : vector<8x16xf32>
    %13 = arith.mulf %12, %12 : vector<8x16xf32>
    %cst_7 = arith.constant dense<0.000000e+00> : vector<8xf32>
    %14 = vector.multi_reduction <add>, %13, %cst_7 [1] : vector<8x16xf32> to vector<8xf32>
    %15 = vector.shape_cast %14 : vector<8xf32> to vector<8x1xf32>
    %cst_8 = arith.constant 6.250000e-02 : f32
    %16 = vector.broadcast %cst_8 : f32 to vector<8x1xf32>
    %17 = arith.mulf %15, %16 : vector<8x1xf32>
    %cst_9 = arith.constant 9.99999974E-6 : f32
    %18 = vector.broadcast %cst_9 : f32 to vector<8x1xf32>
    %19 = arith.addf %17, %18 : vector<8x1xf32>
    %20 = math.rsqrt %19 : vector<8x1xf32>
    %21 = vector.broadcast %20 : vector<8x1xf32> to vector<8x16xf32>
    %22 = arith.mulf %12, %21 : vector<8x16xf32>
    %23 = vector.extract_strided_slice %3 {offsets = [1, 0], sizes = [1, 16], strides = [1, 1]} : vector<3x16xf32> to vector<1x16xf32>
    %24 = vector.broadcast %23 : vector<1x16xf32> to vector<8x16xf32>
    %25 = arith.mulf %22, %24 : vector<8x16xf32>
    %26 = vector.extract_strided_slice %3 {offsets = [2, 0], sizes = [1, 16], strides = [1, 1]} : vector<3x16xf32> to vector<1x16xf32>
    %27 = vector.broadcast %26 : vector<1x16xf32> to vector<8x16xf32>
    %28 = arith.addf %25, %27 : vector<8x16xf32>
    %c0_10 = arith.constant 0 : index
    %c0_11 = arith.constant 0 : index
    %29 = vector.load %arg4[%c0_10, %c0_11] : memref<8x16xf32, #tpu.memory_space<vmem>>, vector<8x16xf32>
    tpu.vector_store %arg4[%c0_10, %c0_11], %28 {strides = array<i32>} : memref<8x16xf32, #tpu.memory_space<vmem>>, vector<8x16xf32>,
    return
  }
  func.func @transform_0(%arg0: i32) -> (i32, i32) {
    %c0_i32 = arith.constant 0 : i32
    %c0_i32_0 = arith.constant 0 : i32
    return %arg0, %c0_i32 : i32, i32
  }
  func.func @transform_1(%arg0: i32) -> (i32, i32) {
    %c0_i32 = arith.constant 0 : i32
    %c0_i32_0 = arith.constant 0 : i32
    %c0_i32_1 = arith.constant 0 : i32
    return %c0_i32, %c0_i32_0 : i32, i32
  }
  func.func @transform_2(%arg0: i32) -> (i32, i32) {
    %c0_i32 = arith.constant 0 : i32
    %c0_i32_0 = arith.constant 0 : i32
    %c0_i32_1 = arith.constant 0 : i32
    return %c0_i32, %c0_i32_0 : i32, i32
  }
  func.func @transform_3(%arg0: i32) -> (i32, i32) {
    %c0_i32 = arith.constant 0 : i32
    %c0_i32_0 = arith.constant 0 : i32
    return %arg0, %c0_i32 : i32, i32
  }
}

</mosaic_0001>

<llo_original>
// kernel: tpu_custom_call.1
$region0: #{tpu_custom_call.1}
  #allocation0 [shape = 'u32[]', space=smem, size = 0x4, offset = 0x4, fixed_abs, tag = 'smem constant byte address 0x4 - core index']
  #allocation1 [shape = 'u32[144,128]{1,0:T(1,128)}', space=vmem, size = 0x12000, scoped, tag = 'internal scratch']
  %s0 = inlined_call_operand.vmem [shape: f32[16,32], index: 0, kind: input, shape index: {}]
  %s1 = inlined_call_operand.vmem [shape: f32[32,16], index: 1, kind: input, shape index: {}]
  %s2 = inlined_call_operand.vmem [shape: f32[3,16], index: 2, kind: input, shape index: {}]
  %s3 = inlined_call_operand.hbm [shape: f32[16,16], index: 3, kind: output, shape index: {}]
  %s4 = sld [smem:[#allocation0]]
  $region45: #{tpu_custom_call.1} parent=0
    _
  %s6 = ssub.s32 1, %s4
  %s7 = scalar_select 0, %s6, %s4
  $region1: #{tpu_custom_call.1} parent=0
    #allocation2 [shape = 'u8[8192]{0}', space=vmem, size = 0x2000, scoped, tag = 'output window, operand 0']
    #allocation3 [shape = 's32[2]{0}', space=sflag, size = 0x8, scoped, tag = 'scoped memory for tpu_custom_call.1']
    %8 = vsyncpa [#allocation3], 0
    %s9 = scalar_lea.sflag [#allocation3], 1
    %10 = vsyncpa %s9, 0
    loop: start=0, step=1, limit=4
    $region2: #{tpu_custom_call.1} parent=1 // loop_pre_header
      _
    $region3: #{tpu_custom_call.1} parent=1 // loop_header
      %s12 = sphi 0, %s16
      %p13 = scmp.ge.s32.totalorder %s12, 4
      %s22 = sphi 0, %s24
      %s25 = sphi 0, %s22
      %s26 = sphi 0, %s25
      %s42 = sphi 0, %s26
      %s46 = sphi 0, %s46
      %s48 = sphi 0, %s46
      %s49 = sphi 0, %s48
      %s63 = sphi 0, %s49
      %s67 = sphi 0, %s67
      %s69 = sphi 0, %s67
      %s70 = sphi 0, %s69
      %s84 = sphi 0, %s70
      %s90 = sphi 0, %s92
      %s93 = sphi 0, %s90
      %s94 = sphi 0, %s93
      %s110 = sphi 0, %s94
    $region4: #{tpu_custom_call.1} parent=1 // loop_header_branch
      %15 = sbr.rel (%p13) target = $region8
    $region5: #{tpu_custom_call.1} parent=1 // loop_body
      %s17 = ssub.s32 %s12, 1
      %s18 = ssub.s32 %s12, 2
      %s19 = sadd.s32 %s12, 1
      %s20 = ssub.s32 %s12, %s19
      %p21 = scmp.eq.s32.totalorder %s20, 0
      %s23 = sadd.s32 %s22, 1
      %s24 = scalar_select %p21, %s22, %s23
      %p27 = pneg %p21
      %p28 = scmp.eq.s32.totalorder %s12, 1
      %p29 = por %p27, %p28
      %p30 = scmp.ne.s32.totalorder %s22, %s25
      %p31 = scmp.eq.s32.totalorder %s12, 0
      %p32 = por %p30, %p31
      %p33 = scmp.ne.s32.totalorder %s22, %s25
      %p34 = scmp.eq.s32.totalorder %s17, 1
      %p35 = por %p33, %p34
      %p36 = scmp.ne.s32.totalorder %s25, %s26
      %p37 = scmp.eq.s32.totalorder %s17, 0
      %p38 = por %p36, %p37
      %p39 = scmp.ne.s32.totalorder %s25, %s26
      %p40 = scmp.eq.s32.totalorder %s18, 1
      %p41 = por %p39, %p40
      %p43 = scmp.ne.s32.totalorder %s26, %s42
      %p44 = scmp.eq.s32.totalorder %s18, 0
      %p45 = por %p43, %p44
      %s47 = sadd.s32 %s46, 1
      %p50 = scmp.eq.s32.totalorder %s12, 1
      %p51 = scmp.ne.s32.totalorder %s46, %s48
      %p52 = scmp.eq.s32.totalorder %s12, 0
      %p53 = por %p51, %p52
      %p54 = scmp.ne.s32.totalorder %s46, %s48
      %p55 = scmp.eq.s32.totalorder %s17, 1
      %p56 = por %p54, %p55
      %p57 = scmp.ne.s32.totalorder %s48, %s49
      %p58 = scmp.eq.s32.totalorder %s17, 0
      %p59 = por %p57, %p58
      %p60 = scmp.ne.s32.totalorder %s48, %s49
      %p61 = scmp.eq.s32.totalorder %s18, 1
      %p62 = por %p60, %p61
      %p64 = scmp.ne.s32.totalorder %s49, %s63
      %p65 = scmp.eq.s32.totalorder %s18, 0
      %p66 = por %p64, %p65
      %s68 = sadd.s32 %s67, 1
      %p71 = scmp.eq.s32.totalorder %s12, 1
      %p72 = scmp.ne.s32.totalorder %s67, %s69
      %p73 = scmp.eq.s32.totalorder %s12, 0
      %p74 = por %p72, %p73
      %p75 = scmp.ne.s32.totalorder %s67, %s69
      %p76 = scmp.eq.s32.totalorder %s17, 1
      %p77 = por %p75, %p76
      %p78 = scmp.ne.s32.totalorder %s69, %s70
      %p79 = scmp.eq.s32.totalorder %s17, 0
      %p80 = por %p78, %p79
      %p81 = scmp.ne.s32.totalorder %s69, %s70
      %p82 = scmp.eq.s32.totalorder %s18, 1
      %p83 = por %p81, %p82
      %p85 = scmp.ne.s32.totalorder %s70, %s84
      %p86 = scmp.eq.s32.totalorder %s18, 0
      %p87 = por %p85, %p86
      %s88 = ssub.s32 %s12, %s19
      %p89 = scmp.eq.s32.totalorder %s88, 0
      %s91 = sadd.s32 %s90, 1
      %s92 = scalar_select %p89, %s90, %s91
      %p95 = pneg %p89
      %p96 = scmp.eq.s32.totalorder %s12, 1
      %p97 = por %p95, %p96
      %p98 = scmp.ne.s32.totalorder %s90, %s93
      %p99 = scmp.eq.s32.totalorder %s12, 0
      %p100 = por %p98, %p99
      %p101 = scmp.ne.s32.totalorder %s90, %s93
      %p102 = scmp.eq.s32.totalorder %s17, 1
      %p103 = por %p101, %p102
      %p104 = scmp.ne.s32.totalorder %s93, %s94
      %p105 = scmp.eq.s32.totalorder %s17, 0
      %p106 = por %p104, %p105
      %p107 = scmp.ne.s32.totalorder %s93, %s94
      %p108 = scmp.eq.s32.totalorder %s18, 1
      %p109 = por %p107, %p108
      %p111 = scmp.ne.s32.totalorder %s94, %s110
      %p112 = scmp.eq.s32.totalorder %s18, 0
      %p113 = por %p111, %p112
      %p114 = scmp.le.s32.totalorder 1, %s12
      %p115 = scmp.lt.s32.totalorder %s12, 3
      %p116 = pnand %p114, %p115
      %p117 = pneg %p116
      // Predicated region
      $region9: #{tpu_custom_call.1} parent=5 // pred_check
        _
      $region10: #{tpu_custom_call.1} parent=5 // pred_check_branch
        %119 = sbr.rel (%p116) target = $region12
      $region11: #{tpu_custom_call.1} parent=5 // pred_region
        %s120 = ssub.s32 %s12, 1
        // Predicated region
        $region13: #{tpu_custom_call.1} parent=11 // pred_check
          %p121 = pneg %p59
        $region14: #{tpu_custom_call.1} parent=11 // pred_check_branch
          %123 = sbr.rel (%p121) target = $region16
        $region15: #{tpu_custom_call.1} parent=11 // pred_region
          _
        $region16: #{tpu_custom_call.1} parent=11 // pred_fallthru
          _
        // Predicated region
        $region17: #{tpu_custom_call.1} parent=11 // pred_check
          %p124 = pneg %p80
        $region18: #{tpu_custom_call.1} parent=11 // pred_check_branch
          %126 = sbr.rel (%p124) target = $region20
        $region19: #{tpu_custom_call.1} parent=11 // pred_region
          _
        $region20: #{tpu_custom_call.1} parent=11 // pred_fallthru
          _
      $region12: #{tpu_custom_call.1} parent=5 // pred_fallthru
        _
      %p127 = scmp.lt.s32.totalorder %s12, 2
      // Predicated region
      $region21: #{tpu_custom_call.1} parent=5 // pred_check
        %p128 = pneg %p127
      $region22: #{tpu_custom_call.1} parent=5 // pred_check_branch
        %130 = sbr.rel (%p128) target = $region24
      $region23: #{tpu_custom_call.1} parent=5 // pred_region
        // Predicated region
        $region25: #{tpu_custom_call.1} parent=23 // pred_check
          %p131 = pneg %p32
        $region26: #{tpu_custom_call.1} parent=23 // pred_check_branch
          %133 = sbr.rel (%p131) target = $region28
        $region27: #{tpu_custom_call.1} parent=23 // pred_region
          %p134 = scmp.lt.s32.totalorder %s12, 1
          %s135 = scalar_select %p134, %s12, 1
          %s136 = smul.addr %s135, 8
          %s137 = scalar_lea.vmem %s0, %s136
        $region28: #{tpu_custom_call.1} parent=23 // pred_fallthru
          _
      $region24: #{tpu_custom_call.1} parent=5 // pred_fallthru
        _
      %p138 = scmp.le.s32.totalorder 1, %s12
      %p139 = scmp.lt.s32.totalorder %s12, 3
      %p140 = pnand %p138, %p139
      %p141 = pneg %p140
      // Predicated region
      $region29: #{tpu_custom_call.1} parent=5 // pred_check
        _
      $region30: #{tpu_custom_call.1} parent=5 // pred_check_branch
        %143 = sbr.rel (%p140) target = $region32
      $region31: #{tpu_custom_call.1} parent=5 // pred_region
        %s144 = ssub.s32 %s12, 1
        %p145 = scmp.lt.s32.totalorder %s17, 1
        %s146 = scalar_select %p145, %s17, 1
        %s147 = smul.addr %s146, 8
        %s148 = scalar_lea.vmem %s0, %s147
        %p149 = pneg %p38
        %p150 = pneg %p35
        %p151 = pneg %p59
        %p152 = pneg %p56
        %p153 = pneg %p80
        %p154 = pneg %p77
        %p155 = pneg %p106
        %p156 = pneg %p103
        %s157 = sand.u32 %s93, 1
        %s158 = scalar_lea.sflag [#allocation3], %s157
        %s159 = sand.u32 %s93, 1
        %s160 = smul.addr %s159, 8
        %s161 = scalar_lea.vmem [#allocation2], %s160
        %p162 = scmp.lt.s32.totalorder %s17, 1
        %s163 = scalar_select %p162, %s17, 1
        %s164 = smul.addr %s163, 8
        %s165 = scalar_lea.vmem %s0, %s164
        %v166 = vld [vmem:[%s165] sm:$0xff]
        %v167 = vld [vmem:[%s1] sm:$0xff]
        %v168 = vld [vmem:[%s1 + $0x8] sm:$0xff]
        %v169 = vld [vmem:[%s1 + $0x10] sm:$0xff]
        %v170 = vld [vmem:[%s1 + $0x18] sm:$0xff]
        %v171 = vld [vmem:[%s2] sm:$0x7]
        %v172 = vlaneseq
        %v173 = vshrl.u32 %v172, 7
        %v174 = vsub.s32 0, %v173
        %v175 = vrot.slane %v171, %v174
        %vm176 = vcmask 261120
        %v178 = vsel %vm176, %v166, 0
        %180 = vmatprep.subr.mxu0 0.0
        %181 = vmatpush1.msra.mxu0 0.0
        %182 = vmatprep.subr.mxu0 0.0
        %183 = vmatpush1.msra.mxu0 0.0
        %184 = vmatprep.subr.mxu0 0.0
        %185 = vmatpush1.msra.mxu0 0.0
        %186 = vmatprep.subr.mxu0 0.0
        %187 = vmatpush1.msra.mxu0 0.0
        %188 = vmatprep.subr.mxu0 0.0
        %189 = vmatpush1.msra.mxu0 0.0
        %190 = vmatprep.subr.mxu0 0.0
        %191 = vmatpush1.msra.mxu0 0.0
        %192 = vmatprep.subr.mxu0 0.0
        %193 = vmatpush1.msra.mxu0 0.0
        %194 = vmatprep.subr.mxu0 0.0
        %195 = vmatpush1.msra.mxu0 0.0
        %196 = vmatprep.subr.mxu0 0.0
        %197 = vmatpush1.msra.mxu0 0.0
        %198 = vmatprep.subr.mxu0 0.0
        %199 = vmatpush1.msra.mxu0 0.0
        %200 = vmatprep.subr.mxu0 0.0
        %201 = vmatpush1.msra.mxu0 0.0
        %202 = vmatprep.subr.mxu0 0.0
        %203 = vmatpush1.msra.mxu0 0.0
        %204 = vmatprep.subr.mxu0 0.0
        %205 = vmatpush1.msra.mxu0 %v170
        %206 = vmatprep.subr.mxu0 0.0
        %207 = vmatpush1.msra.mxu0 %v169
        %208 = vmatprep.subr.mxu0 0.0
        %209 = vmatpush1.msra.mxu0 %v168
        %210 = vmatprep.subr.mxu0 0.0
        %211 = vmatpush1.msra.mxu0 %v167
        %212 = vmatprep.subr.mxu0 0.0
        %213 = vmatpush2.msra.mxu0 0.0
        %214 = vmatprep.subr.mxu0 0.0
        %215 = vmatpush2.msra.mxu0 0.0
        %216 = vmatprep.subr.mxu0 0.0
        %217 = vmatpush2.msra.mxu0 0.0
        %218 = vmatprep.subr.mxu0 0.0
        %219 = vmatpush2.msra.mxu0 0.0
        %220 = vmatprep.subr.mxu0 0.0
        %221 = vmatpush2.msra.mxu0 0.0
        %222 = vmatprep.subr.mxu0 0.0
        %223 = vmatpush2.msra.mxu0 0.0
        %224 = vmatprep.subr.mxu0 0.0
        %225 = vmatpush2.msra.mxu0 0.0
        %226 = vmatprep.subr.mxu0 0.0
        %227 = vmatpush2.msra.mxu0 0.0
        %228 = vmatprep.subr.mxu0 0.0
        %229 = vmatpush2.msra.mxu0 0.0
        %230 = vmatprep.subr.mxu0 0.0
        %231 = vmatpush2.msra.mxu0 0.0
        %232 = vmatprep.subr.mxu0 0.0
        %233 = vmatpush2.msra.mxu0 0.0
        %234 = vmatprep.subr.mxu0 0.0
        %235 = vmatpush2.msra.mxu0 0.0
        %236 = vmatprep.subr.mxu0 0.0
        %237 = vmatpush2.msra.mxu0 0.0
        %238 = vmatprep.subr.mxu0 0.0
        %239 = vmatpush2.msra.mxu0 0.0
        %240 = vmatprep.subr.mxu0 0.0
        %241 = vmatpush2.msra.mxu0 0.0
        %242 = vmatprep.subr.mxu0 0.0
        %243 = vmatpush2.msra.mxu0 0.0
        %244 = vmatprep.mubr.f32.mxu0 0.0
        %245 = vmatmul.mubr.f32.gmra.mxu0 %v178
        %v246 = vpop.f32.mrf.mxu0
        %v247 = vadd.f32 %v175, %v246
        %v248 = vpop.f32.mrf.mxu0
        %249 = vdwg.mxu0
        %vm250 = vcmask 130048
        %v251 = vsel %vm250, %v247, 0.0
        %252 = vadd.xlane.f32.xlu0 %v251
        %v253 = vpop.xlane.xlu0 %252
        %v254 = vmul.f32 %v253, 0.0625
        %v255 = vsub.f32 %v247, %v254
        %v256 = vmul.f32 %v255, %v255
        %v257 = vsel %vm250, %v256, 0.0
        %258 = vadd.xlane.f32.xlu0 %v257
        %v259 = vpop.xlane.xlu0 %258
        %v260 = vmul.f32 %v259, 0.0625
        %v261 = vadd.f32 %v260, 1e-05
        %v262 = vrsqrt.pop %v261
        %v263 = vmul.f32 %v255, %v262
        %v264 = vlaneseq
        %v265 = vshrl.u32 %v264, 7
        %v266 = vsub.s32 1, %v265
        %v267 = vrot.slane %v171, %v266
        %v268 = vmul.f32 %v263, %v267
        %v269 = vlaneseq
        %v270 = vshrl.u32 %v269, 7
        %v271 = vsub.s32 2, %v270
        %v272 = vrot.slane %v171, %v271
        %v273 = vadd.f32 %v268, %v272
        %274 = vst.msk [vmem:[%s161] sm:$0xff] %vm250, %v273
        %s275 = sand.u32 %s93, 1
        %s276 = scalar_lea.sflag [#allocation3], %s275
        %s277 = sand.u32 %s93, 1
        %s278 = smul.addr %s277, 8
        %s279 = scalar_lea.vmem [#allocation2], %s278
        // Predicated region
        $region33: #{tpu_custom_call.1} parent=31 // pred_check
          %p280 = pneg %p103
        $region34: #{tpu_custom_call.1} parent=31 // pred_check_branch
          %282 = sbr.rel (%p280) target = $region36
        $region35: #{tpu_custom_call.1} parent=31 // pred_region
          %s284 = ssub.s32 128, 128
          %285 = vsyncadd %s276, %s284
          %s286 = smul.addr %s17, 128
          %s287 = scalar_lea.hbm %s3, %s286
          %s289 = sshll.u32 %s279, 4
          %s290 = int_to_ptr.vmem [resolvable:$true] %s289
          %292 = dma.vmem_to_hbm [thread:$0]  %s290, 128, %s287, %s276
        $region36: #{tpu_custom_call.1} parent=31 // pred_fallthru
          _
      $region32: #{tpu_custom_call.1} parent=5 // pred_fallthru
        _
      %p293 = scmp.le.s32.totalorder 2, %s12
      // Predicated region
      $region37: #{tpu_custom_call.1} parent=5 // pred_check
        %p294 = pneg %p293
      $region38: #{tpu_custom_call.1} parent=5 // pred_check_branch
        %296 = sbr.rel (%p294) target = $region40
      $region39: #{tpu_custom_call.1} parent=5 // pred_region
        %s297 = ssub.s32 %s12, 2
        // Predicated region
        $region41: #{tpu_custom_call.1} parent=39 // pred_check
          %p298 = pneg %p109
        $region42: #{tpu_custom_call.1} parent=39 // pred_check_branch
          %300 = sbr.rel (%p298) target = $region44
        $region43: #{tpu_custom_call.1} parent=39 // pred_region
          %s301 = sand.u32 %s94, 1
          %s302 = scalar_lea.sflag [#allocation3], %s301
          %s303 = sand.u32 %s94, 1
          %s304 = smul.addr %s303, 8
          %s305 = scalar_lea.vmem [#allocation2], %s304
          %306 = dma.done %s302, 128
        $region44: #{tpu_custom_call.1} parent=39 // pred_fallthru
          _
      $region40: #{tpu_custom_call.1} parent=5 // pred_fallthru
        _
    $region6: #{tpu_custom_call.1} parent=1 // loop_footer
      %s16 = sadd.s32 1, %s12
    $region7: #{tpu_custom_call.1} parent=1 // loop_footer_branch
      %11 = sbr.rel target = $region3
    $region8: #{tpu_custom_call.1} parent=1 // loop_exit
      _
    %307 = vsyncpa [#allocation3], 1
    %s308 = scalar_lea.sflag [#allocation3], 1
    %309 = vsyncpa %s308, 1

// kernel: tpu_custom_call.1
$region0: #{tpu_custom_call.1}
  #allocation0 [shape = 'u32[]', space=smem, size = 0x4, offset = 0x4, fixed_abs, tag = 'smem constant byte address 0x4 - core index']
  #allocation1 [shape = 'u32[144,128]{1,0:T(1,128)}', space=vmem, size = 0x12000, scoped, tag = 'internal scratch']
  %s0 = inlined_call_operand.vmem [shape: f32[16,32], index: 0, kind: input, shape index: {}]
  %s1 = inlined_call_operand.vmem [shape: f32[32,16], index: 1, kind: input, shape index: {}]
  %s2 = inlined_call_operand.vmem [shape: f32[3,16], index: 2, kind: input, shape index: {}]
  %s3 = inlined_call_operand.hbm [shape: f32[16,16], index: 3, kind: output, shape index: {}]
  %s4 = sld [smem:[#allocation0]]
  $region45: #{tpu_custom_call.1} parent=0
    _
  %s6 = ssub.s32 1, %s4
  %s7 = scalar_select 0, %s6, %s4
  $region1: #{tpu_custom_call.1} parent=0
    #allocation2 [shape = 'u8[8192]{0}', space=vmem, size = 0x2000, scoped, tag = 'output window, operand 0']
    #allocation3 [shape = 's32[2]{0}', space=sflag, size = 0x8, scoped, tag = 'scoped memory for tpu_custom_call.1']
    %8 = vsyncpa [#allocation3], 0
    %s9 = scalar_lea.sflag [#allocation3], 1
    %10 = vsyncpa %s9, 0
    loop: start=0, step=1, limit=4
    $region2: #{tpu_custom_call.1} parent=1 // loop_pre_header
      _
    $region3: #{tpu_custom_call.1} parent=1 // loop_header
      %s12 = sphi 0, %s16
      %p13 = scmp.ge.s32.totalorder %s12, 4
      %s22 = sphi 0, %s24
      %s25 = sphi 0, %s22
      %s26 = sphi 0, %s25
      %s42 = sphi 0, %s26
      %s46 = sphi 0, %s46
      %s48 = sphi 0, %s46
      %s49 = sphi 0, %s48
      %s63 = sphi 0, %s49
      %s67 = sphi 0, %s67
      %s69 = sphi 0, %s67
      %s70 = sphi 0, %s69
      %s84 = sphi 0, %s70
      %s90 = sphi 0, %s92
      %s93 = sphi 0, %s90
      %s94 = sphi 0, %s93
      %s110 = sphi 0, %s94
    $region4: #{tpu_custom_call.1} parent=1 // loop_header_branch
      %15 = sbr.rel (%p13) target = $region8
    $region5: #{tpu_custom_call.1} parent=1 // loop_body
      %s17 = ssub.s32 %s12, 1
      %s18 = ssub.s32 %s12, 2
      %s19 = sadd.s32 %s12, 1
      %s20 = ssub.s32 %s12, %s19
      %p21 = scmp.eq.s32.totalorder %s20, 0
      %s23 = sadd.s32 %s22, 1
      %s24 = scalar_select %p21, %s22, %s23
      %p27 = pneg %p21
      %p28 = scmp.eq.s32.totalorder %s12, 1
      %p29 = por %p27, %p28
      %p30 = scmp.ne.s32.totalorder %s22, %s25
      %p31 = scmp.eq.s32.totalorder %s12, 0
      %p32 = por %p30, %p31
      %p33 = scmp.ne.s32.totalorder %s22, %s25
      %p34 = scmp.eq.s32.totalorder %s17, 1
      %p35 = por %p33, %p34
      %p36 = scmp.ne.s32.totalorder %s25, %s26
      %p37 = scmp.eq.s32.totalorder %s17, 0
      %p38 = por %p36, %p37
      %p39 = scmp.ne.s32.totalorder %s25, %s26
      %p40 = scmp.eq.s32.totalorder %s18, 1
      %p41 = por %p39, %p40
      %p43 = scmp.ne.s32.totalorder %s26, %s42
      %p44 = scmp.eq.s32.totalorder %s18, 0
      %p45 = por %p43, %p44
      %s47 = sadd.s32 %s46, 1
      %p50 = scmp.eq.s32.totalorder %s12, 1
      %p51 = scmp.ne.s32.totalorder %s46, %s48
      %p52 = scmp.eq.s32.totalorder %s12, 0
      %p53 = por %p51, %p52
      %p54 = scmp.ne.s32.totalorder %s46, %s48
      %p55 = scmp.eq.s32.totalorder %s17, 1
      %p56 = por %p54, %p55
      %p57 = scmp.ne.s32.totalorder %s48, %s49
      %p58 = scmp.eq.s32.totalorder %s17, 0
      %p59 = por %p57, %p58
      %p60 = scmp.ne.s32.totalorder %s48, %s49
      %p61 = scmp.eq.s32.totalorder %s18, 1
      %p62 = por %p60, %p61
      %p64 = scmp.ne.s32.totalorder %s49, %s63
      %p65 = scmp.eq.s32.totalorder %s18, 0
      %p66 = por %p64, %p65
      %s68 = sadd.s32 %s67, 1
      %p71 = scmp.eq.s32.totalorder %s12, 1
      %p72 = scmp.ne.s32.totalorder %s67, %s69
      %p73 = scmp.eq.s32.totalorder %s12, 0
      %p74 = por %p72, %p73
      %p75 = scmp.ne.s32.totalorder %s67, %s69
      %p76 = scmp.eq.s32.totalorder %s17, 1
      %p77 = por %p75, %p76
      %p78 = scmp.ne.s32.totalorder %s69, %s70
      %p79 = scmp.eq.s32.totalorder %s17, 0
      %p80 = por %p78, %p79
      %p81 = scmp.ne.s32.totalorder %s69, %s70
      %p82 = scmp.eq.s32.totalorder %s18, 1
      %p83 = por %p81, %p82
      %p85 = scmp.ne.s32.totalorder %s70, %s84
      %p86 = scmp.eq.s32.totalorder %s18, 0
      %p87 = por %p85, %p86
      %s88 = ssub.s32 %s12, %s19
      %p89 = scmp.eq.s32.totalorder %s88, 0
      %s91 = sadd.s32 %s90, 1
      %s92 = scalar_select %p89, %s90, %s91
      %p95 = pneg %p89
      %p96 = scmp.eq.s32.totalorder %s12, 1
      %p97 = por %p95, %p96
      %p98 = scmp.ne.s32.totalorder %s90, %s93
      %p99 = scmp.eq.s32.totalorder %s12, 0
      %p100 = por %p98, %p99
      %p101 = scmp.ne.s32.totalorder %s90, %s93
      %p102 = scmp.eq.s32.totalorder %s17, 1
      %p103 = por %p101, %p102
      %p104 = scmp.ne.s32.totalorder %s93, %s94
      %p105 = scmp.eq.s32.totalorder %s17, 0
      %p106 = por %p104, %p105
      %p107 = scmp.ne.s32.totalorder %s93, %s94
      %p108 = scmp.eq.s32.totalorder %s18, 1
      %p109 = por %p107, %p108
      %p111 = scmp.ne.s32.totalorder %s94, %s110
      %p112 = scmp.eq.s32.totalorder %s18, 0
      %p113 = por %p111, %p112
      %p114 = scmp.le.s32.totalorder 1, %s12
      %p115 = scmp.lt.s32.totalorder %s12, 3
      %p116 = pnand %p114, %p115
      %p117 = pneg %p116
      // Predicated region
      $region9: #{tpu_custom_call.1} parent=5 // pred_check
        _
      $region10: #{tpu_custom_call.1} parent=5 // pred_check_branch
        %119 = sbr.rel (%p116) target = $region12
      $region11: #{tpu_custom_call.1} parent=5 // pred_region
        %s120 = ssub.s32 %s12, 1
        // Predicated region
        $region13: #{tpu_custom_call.1} parent=11 // pred_check
          %p121 = pneg %p59
        $region14: #{tpu_custom_call.1} parent=11 // pred_check_branch
          %123 = sbr.rel (%p121) target = $region16
        $region15: #{tpu_custom_call.1} parent=11 // pred_region
          _
        $region16: #{tpu_custom_call.1} parent=11 // pred_fallthru
          _
        // Predicated region
        $region17: #{tpu_custom_call.1} parent=11 // pred_check
          %p124 = pneg %p80
        $region18: #{tpu_custom_call.1} parent=11 // pred_check_branch
          %126 = sbr.rel (%p124) target = $region20
        $region19: #{tpu_custom_call.1} parent=11 // pred_region
          _
        $region20: #{tpu_custom_call.1} parent=11 // pred_fallthru
          _
      $region12: #{tpu_custom_call.1} parent=5 // pred_fallthru
        _
      %p127 = scmp.lt.s32.totalorder %s12, 2
      // Predicated region
      $region21: #{tpu_custom_call.1} parent=5 // pred_check
        %p128 = pneg %p127
      $region22: #{tpu_custom_call.1} parent=5 // pred_check_branch
        %130 = sbr.rel (%p128) target = $region24
      $region23: #{tpu_custom_call.1} parent=5 // pred_region
        // Predicated region
        $region25: #{tpu_custom_call.1} parent=23 // pred_check
          %p131 = pneg %p32
        $region26: #{tpu_custom_call.1} parent=23 // pred_check_branch
          %133 = sbr.rel (%p131) target = $region28
        $region27: #{tpu_custom_call.1} parent=23 // pred_region
          %p134 = scmp.lt.s32.totalorder %s12, 1
          %s135 = scalar_select %p134, %s12, 1
          %s136 = smul.addr %s135, 8
          %s137 = scalar_lea.vmem %s0, %s136
        $region28: #{tpu_custom_call.1} parent=23 // pred_fallthru
          _
      $region24: #{tpu_custom_call.1} parent=5 // pred_fallthru
        _
      %p138 = scmp.le.s32.totalorder 1, %s12
      %p139 = scmp.lt.s32.totalorder %s12, 3
      %p140 = pnand %p138, %p139
      %p141 = pneg %p140
      // Predicated region
      $region29: #{tpu_custom_call.1} parent=5 // pred_check
        _
      $region30: #{tpu_custom_call.1} parent=5 // pred_check_branch
        %143 = sbr.rel (%p140) target = $region32
      $region31: #{tpu_custom_call.1} parent=5 // pred_region
        %s144 = ssub.s32 %s12, 1
        %p145 = scmp.lt.s32.totalorder %s17, 1
        %s146 = scalar_select %p145, %s17, 1
        %s147 = smul.addr %s146, 8
        %s148 = scalar_lea.vmem %s0, %s147
        %p149 = pneg %p38
        %p150 = pneg %p35
        %p151 = pneg %p59
        %p152 = pneg %p56
        %p153 = pneg %p80
        %p154 = pneg %p77
        %p155 = pneg %p106
        %p156 = pneg %p103
        %s157 = sand.u32 %s93, 1
        %s158 = scalar_lea.sflag [#allocation3], %s157
        %s159 = sand.u32 %s93, 1
        %s160 = smul.addr %s159, 8
        %s161 = scalar_lea.vmem [#allocation2], %s160
        %p162 = scmp.lt.s32.totalorder %s17, 1
        %s163 = scalar_select %p162, %s17, 1
        %s164 = smul.addr %s163, 8
        %s165 = scalar_lea.vmem %s0, %s164
        %v166 = vld [vmem:[%s165] sm:$0xff]
        %v167 = vld [vmem:[%s1] sm:$0xff]
        %v168 = vld [vmem:[%s1 + $0x8] sm:$0xff]
        %v169 = vld [vmem:[%s1 + $0x10] sm:$0xff]
        %v170 = vld [vmem:[%s1 + $0x18] sm:$0xff]
        %v171 = vld [vmem:[%s2] sm:$0x7]
        %v172 = vlaneseq
        %v173 = vshrl.u32 %v172, 7
        %v174 = vsub.s32 0, %v173
        %v175 = vrot.slane %v171, %v174
        %vm176 = vcmask 261120
        %v178 = vsel %vm176, %v166, 0
        %180 = vmatprep.subr.mxu0 0.0
        %181 = vmatpush1.msra.mxu0 0.0
        %182 = vmatprep.subr.mxu0 0.0
        %183 = vmatpush1.msra.mxu0 0.0
        %184 = vmatprep.subr.mxu0 0.0
        %185 = vmatpush1.msra.mxu0 0.0
        %186 = vmatprep.subr.mxu0 0.0
        %187 = vmatpush1.msra.mxu0 0.0
        %188 = vmatprep.subr.mxu0 0.0
        %189 = vmatpush1.msra.mxu0 0.0
        %190 = vmatprep.subr.mxu0 0.0
        %191 = vmatpush1.msra.mxu0 0.0
        %192 = vmatprep.subr.mxu0 0.0
        %193 = vmatpush1.msra.mxu0 0.0
        %194 = vmatprep.subr.mxu0 0.0
        %195 = vmatpush1.msra.mxu0 0.0
        %196 = vmatprep.subr.mxu0 0.0
        %197 = vmatpush1.msra.mxu0 0.0
        %198 = vmatprep.subr.mxu0 0.0
        %199 = vmatpush1.msra.mxu0 0.0
        %200 = vmatprep.subr.mxu0 0.0
        %201 = vmatpush1.msra.mxu0 0.0
        %202 = vmatprep.subr.mxu0 0.0
        %203 = vmatpush1.msra.mxu0 0.0
        %204 = vmatprep.subr.mxu0 0.0
        %205 = vmatpush1.msra.mxu0 %v170
        %206 = vmatprep.subr.mxu0 0.0
        %207 = vmatpush1.msra.mxu0 %v169
        %208 = vmatprep.subr.mxu0 0.0
        %209 = vmatpush1.msra.mxu0 %v168
        %210 = vmatprep.subr.mxu0 0.0
        %211 = vmatpush1.msra.mxu0 %v167
        %212 = vmatprep.subr.mxu0 0.0
        %213 = vmatpush2.msra.mxu0 0.0
        %214 = vmatprep.subr.mxu0 0.0
        %215 = vmatpush2.msra.mxu0 0.0
        %216 = vmatprep.subr.mxu0 0.0
        %217 = vmatpush2.msra.mxu0 0.0
        %218 = vmatprep.subr.mxu0 0.0
        %219 = vmatpush2.msra.mxu0 0.0
        %220 = vmatprep.subr.mxu0 0.0
        %221 = vmatpush2.msra.mxu0 0.0
        %222 = vmatprep.subr.mxu0 0.0
        %223 = vmatpush2.msra.mxu0 0.0
        %224 = vmatprep.subr.mxu0 0.0
        %225 = vmatpush2.msra.mxu0 0.0
        %226 = vmatprep.subr.mxu0 0.0
        %227 = vmatpush2.msra.mxu0 0.0
        %228 = vmatprep.subr.mxu0 0.0
        %229 = vmatpush2.msra.mxu0 0.0
        %230 = vmatprep.subr.mxu0 0.0
        %231 = vmatpush2.msra.mxu0 0.0
        %232 = vmatprep.subr.mxu0 0.0
        %233 = vmatpush2.msra.mxu0 0.0
        %234 = vmatprep.subr.mxu0 0.0
        %235 = vmatpush2.msra.mxu0 0.0
        %236 = vmatprep.subr.mxu0 0.0
        %237 = vmatpush2.msra.mxu0 0.0
        %238 = vmatprep.subr.mxu0 0.0
        %239 = vmatpush2.msra.mxu0 0.0
        %240 = vmatprep.subr.mxu0 0.0
        %241 = vmatpush2.msra.mxu0 0.0
        %242 = vmatprep.subr.mxu0 0.0
        %243 = vmatpush2.msra.mxu0 0.0
        %244 = vmatprep.mubr.f32.mxu0 0.0
        %245 = vmatmul.mubr.f32.gmra.mxu0 %v178
        %v246 = vpop.f32.mrf.mxu0
        %v247 = vadd.f32 %v175, %v246
        %v248 = vpop.f32.mrf.mxu0
        %249 = vdwg.mxu0
        %vm250 = vcmask 130048
        %v251 = vsel %vm250, %v247, 0.0
        %252 = vadd.xlane.f32.xlu0 %v251
        %v253 = vpop.xlane.xlu0 %252
        %v254 = vmul.f32 %v253, 0.0625
        %v255 = vsub.f32 %v247, %v254
        %v256 = vmul.f32 %v255, %v255
        %v257 = vsel %vm250, %v256, 0.0
        %258 = vadd.xlane.f32.xlu0 %v257
        %v259 = vpop.xlane.xlu0 %258
        %v260 = vmul.f32 %v259, 0.0625
        %v261 = vadd.f32 %v260, 1e-05
        %v262 = vrsqrt.pop %v261
        %v263 = vmul.f32 %v255, %v262
        %v264 = vlaneseq
        %v265 = vshrl.u32 %v264, 7
        %v266 = vsub.s32 1, %v265
        %v267 = vrot.slane %v171, %v266
        %v268 = vmul.f32 %v263, %v267
        %v269 = vlaneseq
        %v270 = vshrl.u32 %v269, 7
        %v271 = vsub.s32 2, %v270
        %v272 = vrot.slane %v171, %v271
        %v273 = vadd.f32 %v268, %v272
        %274 = vst.msk [vmem:[%s161] sm:$0xff] %vm250, %v273
        %s275 = sand.u32 %s93, 1
        %s276 = scalar_lea.sflag [#allocation3], %s275
        %s277 = sand.u32 %s93, 1
        %s278 = smul.addr %s277, 8
        %s279 = scalar_lea.vmem [#allocation2], %s278
        // Predicated region
        $region33: #{tpu_custom_call.1} parent=31 // pred_check
          %p280 = pneg %p103
        $region34: #{tpu_custom_call.1} parent=31 // pred_check_branch
          %282 = sbr.rel (%p280) target = $region36
        $region35: #{tpu_custom_call.1} parent=31 // pred_region
          %s284 = ssub.s32 128, 128
          %285 = vsyncadd %s276, %s284
          %s286 = smul.addr %s17, 128
          %s287 = scalar_lea.hbm %s3, %s286
          %s289 = sshll.u32 %s279, 4
          %s290 = int_to_ptr.vmem [resolvable:$true] %s289
          %292 = dma.vmem_to_hbm [thread:$0]  %s290, 128, %s287, %s276
        $region36: #{tpu_custom_call.1} parent=31 // pred_fallthru
          _
      $region32: #{tpu_custom_call.1} parent=5 // pred_fallthru
        _
      %p293 = scmp.le.s32.totalorder 2, %s12
      // Predicated region
      $region37: #{tpu_custom_call.1} parent=5 // pred_check
        %p294 = pneg %p293
      $region38: #{tpu_custom_call.1} parent=5 // pred_check_branch
        %296 = sbr.rel (%p294) target = $region40
      $region39: #{tpu_custom_call.1} parent=5 // pred_region
        %s297 = ssub.s32 %s12, 2
        // Predicated region
        $region41: #{tpu_custom_call.1} parent=39 // pred_check
          %p298 = pneg %p109
        $region42: #{tpu_custom_call.1} parent=39 // pred_check_branch
          %300 = sbr.rel (%p298) target = $region44
        $region43: #{tpu_custom_call.1} parent=39 // pred_region
          %s301 = sand.u32 %s94, 1
          %s302 = scalar_lea.sflag [#allocation3], %s301
          %s303 = sand.u32 %s94, 1
          %s304 = smul.addr %s303, 8
          %s305 = scalar_lea.vmem [#allocation2], %s304
          %306 = dma.done %s302, 128
        $region44: #{tpu_custom_call.1} parent=39 // pred_fallthru
          _
      $region40: #{tpu_custom_call.1} parent=5 // pred_fallthru
        _
    $region6: #{tpu_custom_call.1} parent=1 // loop_footer
      %s16 = sadd.s32 1, %s12
    $region7: #{tpu_custom_call.1} parent=1 // loop_footer_branch
      %11 = sbr.rel target = $region3
    $region8: #{tpu_custom_call.1} parent=1 // loop_exit
      _
    %307 = vsyncpa [#allocation3], 1
    %s308 = scalar_lea.sflag [#allocation3], 1
    %309 = vsyncpa %s308, 1

</llo_original>
